<compile_context>
chip_gen: v6e
topology: v6e:2x2x1
jax: 0.10.0
libtpu: 0.0.40
codegen_flags: <defaults>
</compile_context>

<pallas_src>
import functools

import jax
import jax.numpy as jnp
from jax.experimental import pallas as pl
from jax.experimental.pallas import tpu as pltpu


# ---------------------------------------------------------------------------
# Pallas kernels
# ---------------------------------------------------------------------------

def _preprocess_kernel(x_ref, mean_ref, o_ref):
    """x*255 - mean, lane-dense layout.

    x_ref    : (1, 3, H*W)  BGR-ordered image, values in [0, 1]
    mean_ref : (3, 1)       BGR channel means
    o_ref    : (1, 3, H*W)
    """
    o_ref[0] = x_ref[0] * 255.0 - mean_ref[...]


def _conv3x3_relu_kernel(p_ref, w_ref, b_ref, o_ref):
    """One (batch, M-tile) of a 3x3 same-padding conv + ReLU as an MXU matmul.

    p_ref : (1, TM, K)   bf16 im2col patches (K = 9*Cin)
    w_ref : (K, Cout)    bf16 flattened conv weights (resident across M-tiles)
    b_ref : (1, Cout)    f32 bias
    o_ref : (1, TM, Cout) f32
    """
    acc = jnp.dot(p_ref[0], w_ref[...], preferred_element_type=jnp.float32)
    o_ref[0] = jnp.maximum(acc + b_ref[...], 0.0).astype(o_ref.dtype)


def _max4_kernel(a_ref, b_ref, c_ref, d_ref, o_ref):
    """2x2 max-pool: elementwise max of the four shifted views (VPU only)."""
    o_ref[0] = jnp.maximum(jnp.maximum(a_ref[0], b_ref[0]),
                           jnp.maximum(c_ref[0], d_ref[0]))


def _mse_kernel(a_ref, b_ref, o_ref, acc_ref, *, inv_denom):
    """MSE reduction over the batch grid axis with a resident (1,1) accumulator."""
    b = pl.program_id(0)

    @pl.when(b == 0)
    def _():
        acc_ref[...] = jnp.zeros_like(acc_ref)

    d = a_ref[0].astype(jnp.float32) - b_ref[0].astype(jnp.float32)
    err = d * d
    acc_ref[...] += jnp.sum(jnp.sum(err, axis=1, keepdims=True),
                            axis=0, keepdims=True)

    @pl.when(b == pl.num_programs(0) - 1)
    def _():
        o_ref[...] = acc_ref[...] * inv_denom


# ---------------------------------------------------------------------------
# Wrappers (layout glue only — FLOPs stay inside the kernels)
# ---------------------------------------------------------------------------

_RGB_MEAN = jnp.array([129.1863, 104.7624, 93.594], jnp.float32)   # frozen parameter

_VGG_CONV3_CFG = (
    (3, 64), (64, 64), 'pool',
    (64, 128), (128, 128), 'pool',
    (128, 256), (256, 256), (256, 256),
)


def _pick_tile(m, target=512):
    """Largest multiple-of-8 divisor of m that is <= target (or m itself if small)."""
    if m <= target:
        return m
    t = target - (target % 8)
    while t >= 8:
        if m % t == 0:
            return t
        t -= 8
    return m


def _preprocess(img_nchw):
    """(N,3,H,W) RGB in [0,1]  ->  (N,H,W,3) BGR VGG input (x*255 - mean)."""
    N, C, H, W = img_nchw.shape
    assert C == 3
    img_bgr = img_nchw[:, ::-1, :, :].astype(jnp.float32)       # RGB -> BGR (channel glue)
    mean_bgr = _RGB_MEAN[::-1].reshape(3, 1)
    x = img_bgr.reshape(N, 3, H * W)

    out = pl.pallas_call(
        _preprocess_kernel,
        out_shape=jax.ShapeDtypeStruct((N, 3, H * W), jnp.float32),
        grid_spec=pltpu.PrefetchScalarGridSpec(
            num_scalar_prefetch=0,
            grid=(N,),
            in_specs=[
                pl.BlockSpec((1, 3, H * W), lambda b: (b, 0, 0)),
                pl.BlockSpec((3, 1), lambda b: (0, 0)),
            ],
            out_specs=pl.BlockSpec((1, 3, H * W), lambda b: (b, 0, 0)),
        ),
        compiler_params=pltpu.CompilerParams(
            dimension_semantics=("parallel",)),
    )(x, mean_bgr)
    return out.reshape(N, 3, H, W).transpose(0, 2, 3, 1)        # NHWC for the conv stack


def _conv3x3_relu(x_nhwc, w_hwio, bias):
    """3x3 conv, stride 1, pad 1, + ReLU.  x: (N,H,W,Cin); w: (3,3,Cin,Cout)."""
    N, H, W, Cin = x_nhwc.shape
    Cout = w_hwio.shape[-1]
    M = H * W
    K = 9 * Cin
    TM = _pick_tile(M)

    # Cast the 1x activation to bf16 BEFORE the 9x im2col expansion, so patches are
    # materialized and DMA'd in bf16 (halves the dominant HBM traffic).
    xb = x_nhwc.astype(jnp.bfloat16)
    xp = jnp.pad(xb, ((0, 0), (1, 1), (1, 1), (0, 0)))
    # im2col (wrapper-side slicing/concat glue); K ordered (ky, kx, cin)
    patches = jnp.concatenate(
        [xp[:, dy:dy + H, dx:dx + W, :] for dy in range(3) for dx in range(3)],
        axis=-1).reshape(N, M, K)
    w_mat = w_hwio.reshape(K, Cout).astype(jnp.bfloat16)          # rows ordered (ky, kx, cin)
    b_row = bias.reshape(1, Cout).astype(jnp.float32)

    cost = pl.CostEstimate(
        flops=2 * N * M * K * Cout,
        transcendentals=0,
        bytes_accessed=2 * N * M * K + 2 * K * Cout + 4 * Cout + 4 * N * M * Cout)

    out = pl.pallas_call(
        _conv3x3_relu_kernel,
        out_shape=jax.ShapeDtypeStruct((N, M, Cout), jnp.float32),
        grid_spec=pltpu.PrefetchScalarGridSpec(
            num_scalar_prefetch=0,
            grid=(N, M // TM),
            in_specs=[
                pl.BlockSpec((1, TM, K), lambda b, m: (b, m, 0)),
                pl.BlockSpec((K, Cout), lambda b, m: (0, 0)),     # resident across M-tiles
                pl.BlockSpec((1, Cout), lambda b, m: (0, 0)),
            ],
            out_specs=pl.BlockSpec((1, TM, Cout), lambda b, m: (b, m, 0)),
        ),
        compiler_params=pltpu.CompilerParams(
            dimension_semantics=("parallel", "parallel"),
            vmem_limit_bytes=32 * 1024 * 1024),
        cost_estimate=cost,
    )(patches, w_mat, b_row)
    return out.reshape(N, H, W, Cout)


def _maxpool2x2(x_nhwc):
    """2x2 max pool, stride 2."""
    N, H, W, C = x_nhwc.shape
    Ho, Wo = H // 2, W // 2
    M = Ho * Wo
    TM = _pick_tile(M)
    views = [x_nhwc[:, dy::2, dx::2, :].reshape(N, M, C)
             for dy in range(2) for dx in range(2)]
    out = pl.pallas_call(
        _max4_kernel,
        out_shape=jax.ShapeDtypeStruct((N, M, C), jnp.float32),
        grid_spec=pltpu.PrefetchScalarGridSpec(
            num_scalar_prefetch=0,
            grid=(N, M // TM),
            in_specs=[pl.BlockSpec((1, TM, C), lambda b, m: (b, m, 0))] * 4,
            out_specs=pl.BlockSpec((1, TM, C), lambda b, m: (b, m, 0)),
        ),
        compiler_params=pltpu.CompilerParams(
            dimension_semantics=("parallel", "parallel")),
    )(*views)
    return out.reshape(N, Ho, Wo, C)


def _mse_loss(a, b):
    """mean((a - b)**2) over all elements (nn.MSELoss default). a, b: (N, M, C)."""
    N, M, C = a.shape
    kernel = functools.partial(_mse_kernel, inv_denom=1.0 / float(a.size))
    out = pl.pallas_call(
        kernel,
        out_shape=jax.ShapeDtypeStruct((1, 1), jnp.float32),
        grid_spec=pltpu.PrefetchScalarGridSpec(
            num_scalar_prefetch=0,
            grid=(N,),
            in_specs=[pl.BlockSpec((1, M, C), lambda i: (i, 0, 0)),
                      pl.BlockSpec((1, M, C), lambda i: (i, 0, 0))],
            out_specs=pl.BlockSpec((1, 1), lambda i: (0, 0)),
            scratch_shapes=[pltpu.VMEM((1, 1), jnp.float32)],
        ),
        compiler_params=pltpu.CompilerParams(
            dimension_semantics=("arbitrary",)),
    )(a.astype(jnp.float32), b.astype(jnp.float32))
    return out[0, 0]


def init_vgg_conv3_params(key):
    """Deterministic stand-in weights for netVgg_conv3 (checkpoint unavailable)."""
    params = []
    for cfg in _VGG_CONV3_CFG:
        if cfg == 'pool':
            continue
        cin, cout = cfg
        key, kw, kb = jax.random.split(key, 3)
        w = jax.random.normal(kw, (3, 3, cin, cout), jnp.float32) * (0.1 / jnp.sqrt(9.0 * cin))
        b = jax.random.normal(kb, (cout,), jnp.float32) * 0.01
        params.append((w, b))
    return params


def vgg_conv3_features(x_nhwc, params):
    feat = x_nhwc
    p_iter = iter(params)
    for cfg in _VGG_CONV3_CFG:
        if cfg == 'pool':
            feat = _maxpool2x2(feat)
        else:
            w, b = next(p_iter)
            feat = _conv3x3_relu(feat, w, b)
    return feat


def vgg_face_loss(restored, gt, params):
    """JAX/Pallas equivalent of VggFaceLoss.forward(restored, gt).

    restored, gt : (N, 3, H, W) NCHW images in [0, 1].
    Returns a scalar MSE between VGG-conv3 features.
    """
    N = restored.shape[0]
    both = jnp.concatenate([restored, gt], axis=0)        # single feature pass for 2N images
    x = _preprocess(both)
    feat = vgg_conv3_features(x, params)
    Nf, Hf, Wf, Cf = feat.shape
    feat = feat.reshape(Nf, Hf * Wf, Cf)
    return _mse_loss(feat[:N], feat[N:])


if __name__ == "__main__":
    key = jax.random.PRNGKey(0)
    k_params, k_res, k_gt = jax.random.split(key, 3)

    N, C, H, W = 2, 3, 16, 16
    params = init_vgg_conv3_params(k_params)
    restored = jax.random.uniform(k_res, (N, C, H, W), jnp.float32)
    gt = jax.random.uniform(k_gt, (N, C, H, W), jnp.float32)

    loss = vgg_face_loss(restored, gt, params)
    jax.block_until_ready(loss)

    assert loss.shape == ()
    assert bool(jnp.isfinite(loss))
    print("KERNEL_OK")
</pallas_src>

<mosaic_0001>
module attributes {stable_mosaic.version = 11 : i64} {
  func.func @_preprocess_kernel(%arg0: i32, %arg1: memref<1x3x256xf32, #tpu.memory_space<vmem>>, %arg2: memref<3x1xf32, #tpu.memory_space<vmem>>, %arg3: memref<1x3x256xf32, #tpu.memory_space<vmem>>) attributes {dimension_semantics = [#tpu.dimension_semantics<parallel>], iteration_bounds = array<i64: 4>, scalar_prefetch = 0 : i64, scratch_operands = 0 : i64, tpu.core_type = #tpu.core_type<tc>, window_params = [{transform_indices = @transform_0, window_bounds = array<i64: 1, 3, 256>}, {pipeline_mode = #tpu.pipeline_mode<synchronous>, transform_indices = @transform_1, window_bounds = array<i64: 3, 1>}, {transform_indices = @transform_2, window_bounds = array<i64: 1, 3, 256>}]} {
    %c0 = arith.constant 0 : index
    %c0_0 = arith.constant 0 : index
    %c0_1 = arith.constant 0 : index
    %0 = vector.load %arg1[%c0, %c0_0, %c0_1] : memref<1x3x256xf32, #tpu.memory_space<vmem>>, vector<1x3x256xf32>
    %1 = vector.shape_cast %0 : vector<1x3x256xf32> to vector<3x256xf32>
    %cst = arith.constant 2.550000e+02 : f32
    %2 = vector.broadcast %cst : f32 to vector<3x256xf32>
    %3 = arith.mulf %1, %2 : vector<3x256xf32>
    %c0_2 = arith.constant 0 : index
    %c0_3 = arith.constant 0 : index
    %4 = vector.load %arg2[%c0_2, %c0_3] : memref<3x1xf32, #tpu.memory_space<vmem>>, vector<3x1xf32>
    %5 = vector.broadcast %4 : vector<3x1xf32> to vector<3x256xf32>
    %6 = arith.subf %3, %5 : vector<3x256xf32>
    %c0_4 = arith.constant 0 : index
    %c0_5 = arith.constant 0 : index
    %c0_6 = arith.constant 0 : index
    %7 = vector.load %arg3[%c0_4, %c0_5, %c0_6] : memref<1x3x256xf32, #tpu.memory_space<vmem>>, vector<1x3x256xf32>
    %8 = vector.shape_cast %7 : vector<1x3x256xf32> to vector<3x256xf32>
    %9 = vector.shape_cast %6 : vector<3x256xf32> to vector<1x3x256xf32>
    tpu.vector_store %arg3[%c0_4, %c0_5, %c0_6], %9 {strides = array<i32>} : memref<1x3x256xf32, #tpu.memory_space<vmem>>, vector<1x3x256xf32>,
    return
  }
  func.func @transform_0(%arg0: i32) -> (i32, i32, i32) {
    %c0_i32 = arith.constant 0 : i32
    %c0_i32_0 = arith.constant 0 : i32
    %c0_i32_1 = arith.constant 0 : i32
    return %arg0, %c0_i32, %c0_i32_0 : i32, i32, i32
  }
  func.func @transform_1(%arg0: i32) -> (i32, i32) {
    %c0_i32 = arith.constant 0 : i32
    %c0_i32_0 = arith.constant 0 : i32
    %c0_i32_1 = arith.constant 0 : i32
    return %c0_i32, %c0_i32_0 : i32, i32
  }
  func.func @transform_2(%arg0: i32) -> (i32, i32, i32) {
    %c0_i32 = arith.constant 0 : i32
    %c0_i32_0 = arith.constant 0 : i32
    %c0_i32_1 = arith.constant 0 : i32
    return %arg0, %c0_i32, %c0_i32_0 : i32, i32, i32
  }
}

</mosaic_0001>

<llo_original>
// kernel: tpu_custom_call.1
$region0: #{tpu_custom_call.1}
  #allocation0 [shape = 'u32[]', space=smem, size = 0x4, offset = 0x4, fixed_abs, tag = 'smem constant byte address 0x4 - core index']
  #allocation1 [shape = 'u32[144,128]{1,0:T(1,128)}', space=vmem, size = 0x12000, scoped, tag = 'internal scratch']
  %s0 = inlined_call_operand.vmem [shape: f32[4,3,256], index: 0, kind: input, shape index: {}]
  %s1 = inlined_call_operand.vmem [shape: f32[3,1], index: 1, kind: input, shape index: {}]
  %s2 = inlined_call_operand.vmem [shape: f32[4,3,256], index: 2, kind: output, shape index: {}]
  %s3 = sld [smem:[#allocation0]]
  $region41: #{tpu_custom_call.1} parent=0
    _
  %s5 = ssub.s32 1, %s3
  %s6 = scalar_select 0, %s5, %s3
  loop: start=0, step=1, limit=6
  $region2: #{tpu_custom_call.1} parent=0 // loop_pre_header
    _
  $region3: #{tpu_custom_call.1} parent=0 // loop_header
    %s8 = sphi 0, %s12
    %p9 = scmp.ge.s32.totalorder %s8, 6
    %s18 = sphi 0, %s20
    %s21 = sphi 0, %s18
    %s22 = sphi 0, %s21
    %s38 = sphi 0, %s22
    %s42 = sphi 0, %s42
    %s44 = sphi 0, %s42
    %s45 = sphi 0, %s44
    %s59 = sphi 0, %s45
    %s65 = sphi 0, %s67
    %s68 = sphi 0, %s65
    %s69 = sphi 0, %s68
    %s85 = sphi 0, %s69
  $region4: #{tpu_custom_call.1} parent=0 // loop_header_branch
    %11 = sbr.rel (%p9) target = $region8
  $region5: #{tpu_custom_call.1} parent=0 // loop_body
    %s13 = ssub.s32 %s8, 1
    %s14 = ssub.s32 %s8, 2
    %s15 = sadd.s32 %s8, 1
    %s16 = ssub.s32 %s8, %s15
    %p17 = scmp.eq.s32.totalorder %s16, 0
    %s19 = sadd.s32 %s18, 1
    %s20 = scalar_select %p17, %s18, %s19
    %p23 = pneg %p17
    %p24 = scmp.eq.s32.totalorder %s8, 3
    %p25 = por %p23, %p24
    %p26 = scmp.ne.s32.totalorder %s18, %s21
    %p27 = scmp.eq.s32.totalorder %s8, 0
    %p28 = por %p26, %p27
    %p29 = scmp.ne.s32.totalorder %s18, %s21
    %p30 = scmp.eq.s32.totalorder %s13, 3
    %p31 = por %p29, %p30
    %p32 = scmp.ne.s32.totalorder %s21, %s22
    %p33 = scmp.eq.s32.totalorder %s13, 0
    %p34 = por %p32, %p33
    %p35 = scmp.ne.s32.totalorder %s21, %s22
    %p36 = scmp.eq.s32.totalorder %s14, 3
    %p37 = por %p35, %p36
    %p39 = scmp.ne.s32.totalorder %s22, %s38
    %p40 = scmp.eq.s32.totalorder %s14, 0
    %p41 = por %p39, %p40
    %s43 = sadd.s32 %s42, 1
    %p46 = scmp.eq.s32.totalorder %s8, 3
    %p47 = scmp.ne.s32.totalorder %s42, %s44
    %p48 = scmp.eq.s32.totalorder %s8, 0
    %p49 = por %p47, %p48
    %p50 = scmp.ne.s32.totalorder %s42, %s44
    %p51 = scmp.eq.s32.totalorder %s13, 3
    %p52 = por %p50, %p51
    %p53 = scmp.ne.s32.totalorder %s44, %s45
    %p54 = scmp.eq.s32.totalorder %s13, 0
    %p55 = por %p53, %p54
    %p56 = scmp.ne.s32.totalorder %s44, %s45
    %p57 = scmp.eq.s32.totalorder %s14, 3
    %p58 = por %p56, %p57
    %p60 = scmp.ne.s32.totalorder %s45, %s59
    %p61 = scmp.eq.s32.totalorder %s14, 0
    %p62 = por %p60, %p61
    %s63 = ssub.s32 %s8, %s15
    %p64 = scmp.eq.s32.totalorder %s63, 0
    %s66 = sadd.s32 %s65, 1
    %s67 = scalar_select %p64, %s65, %s66
    %p70 = pneg %p64
    %p71 = scmp.eq.s32.totalorder %s8, 3
    %p72 = por %p70, %p71
    %p73 = scmp.ne.s32.totalorder %s65, %s68
    %p74 = scmp.eq.s32.totalorder %s8, 0
    %p75 = por %p73, %p74
    %p76 = scmp.ne.s32.totalorder %s65, %s68
    %p77 = scmp.eq.s32.totalorder %s13, 3
    %p78 = por %p76, %p77
    %p79 = scmp.ne.s32.totalorder %s68, %s69
    %p80 = scmp.eq.s32.totalorder %s13, 0
    %p81 = por %p79, %p80
    %p82 = scmp.ne.s32.totalorder %s68, %s69
    %p83 = scmp.eq.s32.totalorder %s14, 3
    %p84 = por %p82, %p83
    %p86 = scmp.ne.s32.totalorder %s69, %s85
    %p87 = scmp.eq.s32.totalorder %s14, 0
    %p88 = por %p86, %p87
    %p89 = scmp.le.s32.totalorder 1, %s8
    %p90 = scmp.lt.s32.totalorder %s8, 5
    %p91 = pnand %p89, %p90
    %p92 = pneg %p91
    // Predicated region
    $region9: #{tpu_custom_call.1} parent=5 // pred_check
      _
    $region10: #{tpu_custom_call.1} parent=5 // pred_check_branch
      %94 = sbr.rel (%p91) target = $region12
    $region11: #{tpu_custom_call.1} parent=5 // pred_region
      %s95 = ssub.s32 %s8, 1
      // Predicated region
      $region13: #{tpu_custom_call.1} parent=11 // pred_check
        %p96 = pneg %p55
      $region14: #{tpu_custom_call.1} parent=11 // pred_check_branch
        %98 = sbr.rel (%p96) target = $region16
      $region15: #{tpu_custom_call.1} parent=11 // pred_region
        _
      $region16: #{tpu_custom_call.1} parent=11 // pred_fallthru
        _
    $region12: #{tpu_custom_call.1} parent=5 // pred_fallthru
      _
    %p99 = scmp.lt.s32.totalorder %s8, 4
    // Predicated region
    $region17: #{tpu_custom_call.1} parent=5 // pred_check
      %p100 = pneg %p99
    $region18: #{tpu_custom_call.1} parent=5 // pred_check_branch
      %102 = sbr.rel (%p100) target = $region20
    $region19: #{tpu_custom_call.1} parent=5 // pred_region
      // Predicated region
      $region21: #{tpu_custom_call.1} parent=19 // pred_check
        %p103 = pneg %p28
      $region22: #{tpu_custom_call.1} parent=19 // pred_check_branch
        %105 = sbr.rel (%p103) target = $region24
      $region23: #{tpu_custom_call.1} parent=19 // pred_region
        %p106 = scmp.lt.s32.totalorder %s8, 3
        %s107 = scalar_select %p106, %s8, 3
        %s108 = smul.addr %s107, 2
        %s109 = smul.addr %s108, 4
        %s110 = scalar_lea.vmem %s0, %s109
      $region24: #{tpu_custom_call.1} parent=19 // pred_fallthru
        _
    $region20: #{tpu_custom_call.1} parent=5 // pred_fallthru
      _
    %p111 = scmp.le.s32.totalorder 1, %s8
    %p112 = scmp.lt.s32.totalorder %s8, 5
    %p113 = pnand %p111, %p112
    %p114 = pneg %p113
    // Predicated region
    $region25: #{tpu_custom_call.1} parent=5 // pred_check
      _
    $region26: #{tpu_custom_call.1} parent=5 // pred_check_branch
      %116 = sbr.rel (%p113) target = $region28
    $region27: #{tpu_custom_call.1} parent=5 // pred_region
      %s117 = ssub.s32 %s8, 1
      %p118 = scmp.lt.s32.totalorder %s13, 3
      %s119 = scalar_select %p118, %s13, 3
      %s120 = smul.addr %s119, 2
      %s121 = smul.addr %s120, 4
      %s122 = scalar_lea.vmem %s0, %s121
      %p123 = pneg %p34
      %p124 = pneg %p31
      %p125 = pneg %p55
      %p126 = pneg %p52
      %p127 = pneg %p81
      %p128 = pneg %p78
      %p129 = scmp.lt.s32.totalorder %s13, 3
      %s130 = scalar_select %p129, %s13, 3
      %s131 = smul.addr %s130, 2
      %s132 = smul.addr %s131, 4
      %s133 = scalar_lea.vmem %s2, %s132
      %p134 = scmp.lt.s32.totalorder %s13, 3
      %s135 = scalar_select %p134, %s13, 3
      %s136 = smul.addr %s135, 2
      %s137 = smul.addr %s136, 4
      %s138 = scalar_lea.vmem %s0, %s137
      %p139 = scmp.lt.s32.totalorder %s13, 3
      %s140 = scalar_select %p139, %s13, 3
      %s141 = smul.addr %s140, 2
      %s142 = smul.addr %s141, 4
      %s143 = scalar_lea.vmem %s2, %s142
      %v144 = vld [vmem:[%s138] sm:$0x77]
      %v145 = vmul.f32 %v144, 255.0
      %v146 = vld [vmem:[%s1] sm:$0x7]
      %148 = vset.pattern.permute.xlu0 0
      %149 = vperm.xlu0 %148, %v146
      %v150 = vpop.permute.xlu0 %149
      %v152 = vunpack.c.l.s4 839922192
      %v153 = vunpack.c.0.s8 %v152
      %v154 = vlaneseq
      %v155 = vshrl.u32 %v154, 7
      %v156 = vsub.s32 %v153, %v155
      %v157 = vrot.slane %v150, %v156
      %v159 = vsub.f32 %v145, %v157
      %160 = vst [vmem:[%s143] sm:$0x77] %v159
      %p161 = scmp.lt.s32.totalorder %s13, 3
      %s162 = scalar_select %p161, %s13, 3
      %s163 = smul.addr %s162, 2
      %s164 = smul.addr %s163, 4
      %s165 = scalar_lea.vmem %s2, %s164
      // Predicated region
      $region29: #{tpu_custom_call.1} parent=27 // pred_check
        %p166 = pneg %p78
      $region30: #{tpu_custom_call.1} parent=27 // pred_check_branch
        %168 = sbr.rel (%p166) target = $region32
      $region31: #{tpu_custom_call.1} parent=27 // pred_region
        _
      $region32: #{tpu_custom_call.1} parent=27 // pred_fallthru
        _
    $region28: #{tpu_custom_call.1} parent=5 // pred_fallthru
      _
    %p169 = scmp.le.s32.totalorder 2, %s8
    // Predicated region
    $region33: #{tpu_custom_call.1} parent=5 // pred_check
      %p170 = pneg %p169
    $region34: #{tpu_custom_call.1} parent=5 // pred_check_branch
      %172 = sbr.rel (%p170) target = $region36
    $region35: #{tpu_custom_call.1} parent=5 // pred_region
      %s173 = ssub.s32 %s8, 2
      // Predicated region
      $region37: #{tpu_custom_call.1} parent=35 // pred_check
        %p174 = pneg %p84
      $region38: #{tpu_custom_call.1} parent=35 // pred_check_branch
        %176 = sbr.rel (%p174) target = $region40
      $region39: #{tpu_custom_call.1} parent=35 // pred_region
        %p177 = scmp.lt.s32.totalorder %s14, 3
        %s178 = scalar_select %p177, %s14, 3
        %s179 = smul.addr %s178, 2
        %s180 = smul.addr %s179, 4
        %s181 = scalar_lea.vmem %s2, %s180
      $region40: #{tpu_custom_call.1} parent=35 // pred_fallthru
        _
    $region36: #{tpu_custom_call.1} parent=5 // pred_fallthru
      _
  $region6: #{tpu_custom_call.1} parent=0 // loop_footer
    %s12 = sadd.s32 1, %s8
  $region7: #{tpu_custom_call.1} parent=0 // loop_footer_branch
    %7 = sbr.rel target = $region3
  $region8: #{tpu_custom_call.1} parent=0 // loop_exit
    _

</llo_original>
